<compile_context>
chip_gen: v7x
topology: tpu7x:2x2x1
jax: 0.10.0
libtpu: 0.0.40
codegen_flags: <defaults>
</compile_context>

<pallas_src>
import functools

import jax
import jax.numpy as jnp
from jax.experimental import pallas as pl
from jax.experimental.pallas import tpu as pltpu

NUM_TAXONOMIES = 6
DIM_TAXONOMY = 5                     # delta_difficulties=True
CORE_DIMS = [128, 128, 64, 32]
VARK_DIM = 16
HEAD_DIM = VARK_DIM + NUM_TAXONOMIES * DIM_TAXONOMY   # 46 useful columns
LANE = 128                            # lane width / padded hidden width
PARAM_ROWS = 16                       # param slab rows (9 used, padded to 16)
BN_EPS = 1e-5


def _round_up(n, m):
    return ((n + m - 1) // m) * m


# --------------------------------------------------------------------------
# Kernel
# --------------------------------------------------------------------------
def model_kernel(x_ref, w_ref, p_ref, out_ref, *, in_dim_pad):
    """One BN group (one logical forward) per grid step.

    x_ref   : (B, in_dim_pad) f32        -- per-step block
    w_ref   : (in_dim_pad + 4*128, 128) bf16 weight slab  -- resident
    p_ref   : (16, 128) f32 param slab (gammas/betas/head bias) -- resident
    out_ref : (B, 128) f32 lane-dense fused head output
    """
    b = x_ref.shape[0]
    inv_b = 1.0 / b
    h = x_ref[...]                                     # (B, in_dim_pad) f32

    row = 0
    k_dims = (in_dim_pad, LANE, LANE, LANE)            # contraction dims
    for layer, k in enumerate(k_dims):
        w = w_ref[row:row + k, :]                      # static, tile-aligned
        row += k
        # bf16 MXU matmul, f32 accumulation.
        z = jnp.dot(h.astype(jnp.bfloat16), w,
                    preferred_element_type=jnp.float32)
        gamma = p_ref[2 * layer:2 * layer + 1, :]      # (1, 128)
        beta = p_ref[2 * layer + 1:2 * layer + 2, :]   # (1, 128)
        # Training-mode BatchNorm1d, two-pass centered variance, then ReLU.
        mean = jnp.sum(z, axis=0, keepdims=True) * inv_b
        d = z - mean
        var = jnp.sum(d * d, axis=0, keepdims=True) * inv_b
        scale = gamma * jax.lax.rsqrt(var + BN_EPS)    # EUP rsqrt
        h = jnp.maximum(d * scale + beta, 0.0)         # all f32 VPU

    # Fused heads: one (128,128) matmul + bias -> one unmasked (B,128) store.
    wh = w_ref[row:row + LANE, :]
    bias = p_ref[8:9, :]
    out_ref[...] = (jnp.dot(h.astype(jnp.bfloat16), wh,
                            preferred_element_type=jnp.float32) + bias)


# --------------------------------------------------------------------------
# Parameter packing (done once, outside the kernel)
# --------------------------------------------------------------------------
def prepare_params(p, in_dim):
    """Packs all weights into one bf16 slab and all small params into one
    f32 slab.  Zero-padding everywhere keeps padded lanes exactly zero all the
    way through the network (gamma/beta/bias padding must stay zero)."""
    in_dim_pad = _round_up(max(in_dim, 1), 16)         # bf16 sublane-tile align

    def pad2(a, rows, cols):
        return jnp.pad(a, ((0, rows - a.shape[0]), (0, cols - a.shape[1])))

    # Per-layer weights, all padded to 128 output lanes (and 128 input rows
    # past layer 1), so every in-kernel block is (k, 128).
    w1 = pad2(p["w1"], in_dim_pad, LANE)               # (in_dim_pad, 128)
    w2 = pad2(p["w2"], LANE, LANE)                     # (128, 128)
    w3 = pad2(p["w3"], LANE, LANE)                     # (128, 128) true (128,64)
    w4 = pad2(p["w4"], LANE, LANE)                     # (128, 128) true (64,32)

    # Fuse vark (32,16) + taxonomy heads (6,32,5)->(32,30) into (32,46).
    wt_flat = jnp.transpose(p["wt"], (1, 0, 2)).reshape(
        CORE_DIMS[-1], NUM_TAXONOMIES * DIM_TAXONOMY)
    wh = jnp.concatenate([p["wv"], wt_flat], axis=1)   # (32, 46)
    wh = pad2(wh, LANE, LANE)                          # (128, 128)

    weight_slab = jnp.concatenate(
        [w1, w2, w3, w4, wh], axis=0).astype(jnp.bfloat16)

    # Param slab: rows 2l / 2l+1 = gamma_{l+1} / beta_{l+1}; row 8 = head bias.
    bt_flat = jnp.transpose(p["bt"], (1, 0, 2)).reshape(
        1, NUM_TAXONOMIES * DIM_TAXONOMY)
    bh = jnp.concatenate([p["bv"], bt_flat], axis=1)   # (1, 46)
    rows = []
    for li in range(1, 5):
        rows.append(pad2(p[f"g{li}"], 1, LANE))
        rows.append(pad2(p[f"b{li}"], 1, LANE))
    rows.append(pad2(bh, 1, LANE))
    param_slab = jnp.concatenate(rows, axis=0)         # (9, 128) f32
    param_slab = jnp.pad(
        param_slab, ((0, PARAM_ROWS - param_slab.shape[0]), (0, 0)))

    return {"w": weight_slab, "p": param_slab,
            "in_dim": in_dim, "in_dim_pad": in_dim_pad}


# --------------------------------------------------------------------------
# Forward wrapper
# --------------------------------------------------------------------------
@functools.partial(jax.jit, static_argnames=("bn_group", "in_dim_pad"))
def _forward_padded(x_pad, weight_slab, param_slab, bn_group, in_dim_pad):
    n = x_pad.shape[0]
    n_groups = n // bn_group
    kernel = functools.partial(model_kernel, in_dim_pad=in_dim_pad)

    flops = n_groups * 2 * bn_group * LANE * (in_dim_pad + 4 * LANE)
    bytes_accessed = (x_pad.size * 4 + weight_slab.size * 2
                      + param_slab.size * 4 + n * LANE * 4)
    cost = pl.CostEstimate(flops=flops,
                           transcendentals=n_groups * 4 * LANE,
                           bytes_accessed=bytes_accessed)

    return pl.pallas_call(
        kernel,
        out_shape=jax.ShapeDtypeStruct((n, LANE), jnp.float32),
        grid=(n_groups,),
        in_specs=[
            # per-group activation block
            pl.BlockSpec((bn_group, in_dim_pad), lambda i: (i, 0)),
            # weight / param slabs: same block every step -> VMEM-resident
            pl.BlockSpec(weight_slab.shape, lambda i: (0, 0)),
            pl.BlockSpec(param_slab.shape, lambda i: (0, 0)),
        ],
        out_specs=pl.BlockSpec((bn_group, LANE), lambda i: (i, 0)),
        compiler_params=pltpu.CompilerParams(
            dimension_semantics=("parallel",)),      # v7x: 2 TCs split groups
        cost_estimate=cost,
    )(x_pad, weight_slab, param_slab)


def model_forward(x, prep, bn_group=None):
    """x: (N, in_dim).  Each consecutive `bn_group` rows form one independent
    forward (one BatchNorm group).  bn_group=None -> whole x is one forward,
    matching the PyTorch module's semantics exactly."""
    n, in_dim = x.shape
    if bn_group is None:
        bn_group = n
    assert n % bn_group == 0 and bn_group % 8 == 0
    in_dim_pad = prep["in_dim_pad"]
    x_pad = jnp.pad(x, ((0, 0), (0, in_dim_pad - in_dim)))
    out = _forward_padded(x_pad, prep["w"], prep["p"], bn_group, in_dim_pad)
    vark = out[:, :VARK_DIM]
    tax = [out[:, VARK_DIM + i * DIM_TAXONOMY: VARK_DIM + (i + 1) * DIM_TAXONOMY]
           for i in range(NUM_TAXONOMIES)]
    return vark, tax


# --------------------------------------------------------------------------
# Parameter init + references
# --------------------------------------------------------------------------
def init_params(key, in_dim):
    dims = [in_dim] + CORE_DIMS
    keys = jax.random.split(key, 16)
    p = {}
    for li in range(4):
        fan_in, fan_out = dims[li], dims[li + 1]
        p[f"w{li + 1}"] = (jax.random.normal(keys[li], (fan_in, fan_out),
                                             dtype=jnp.float32)
                           / jnp.sqrt(jnp.float32(fan_in)))
        p[f"g{li + 1}"] = jnp.ones((1, fan_out), jnp.float32) \
            + 0.01 * jax.random.normal(keys[4 + li], (1, fan_out), jnp.float32)
        p[f"b{li + 1}"] = 0.01 * jax.random.normal(keys[8 + li], (1, fan_out),
                                                   jnp.float32)
    p["wv"] = (jax.random.normal(keys[12], (CORE_DIMS[-1], VARK_DIM),
                                 jnp.float32)
               / jnp.sqrt(jnp.float32(CORE_DIMS[-1])))
    p["bv"] = 0.01 * jax.random.normal(keys[13], (1, VARK_DIM), jnp.float32)
    p["wt"] = (jax.random.normal(
        keys[14], (NUM_TAXONOMIES, CORE_DIMS[-1], DIM_TAXONOMY), jnp.float32)
        / jnp.sqrt(jnp.float32(CORE_DIMS[-1])))
    p["bt"] = 0.01 * jax.random.normal(
        keys[15], (NUM_TAXONOMIES, 1, DIM_TAXONOMY), jnp.float32)
    return p


def reference_forward_matched(x, prep, bn_group):
    """Pure-JAX reference replicating the kernel's padded/bf16 numerics."""
    in_dim_pad = prep["in_dim_pad"]
    x_pad = jnp.pad(x, ((0, 0), (0, in_dim_pad - x.shape[1])))
    w_slab, p_slab = prep["w"], prep["p"]
    outs = []
    for g in range(x.shape[0] // bn_group):
        h = x_pad[g * bn_group:(g + 1) * bn_group]
        inv_b = 1.0 / bn_group
        row = 0
        for layer, k in enumerate((in_dim_pad, LANE, LANE, LANE)):
            w = w_slab[row:row + k, :]
            row += k
            z = jnp.dot(h.astype(jnp.bfloat16), w,
                        preferred_element_type=jnp.float32)
            gamma = p_slab[2 * layer:2 * layer + 1, :]
            beta = p_slab[2 * layer + 1:2 * layer + 2, :]
            mean = jnp.sum(z, axis=0, keepdims=True) * inv_b
            d = z - mean
            var = jnp.sum(d * d, axis=0, keepdims=True) * inv_b
            h = jnp.maximum(d * (gamma * jax.lax.rsqrt(var + BN_EPS)) + beta,
                            0.0)
        wh = w_slab[row:row + LANE, :]
        outs.append(jnp.dot(h.astype(jnp.bfloat16), wh,
                            preferred_element_type=jnp.float32)
                    + p_slab[8:9, :])
    out = jnp.concatenate(outs, axis=0)
    vark = out[:, :VARK_DIM]
    tax = [out[:, VARK_DIM + i * DIM_TAXONOMY: VARK_DIM + (i + 1) * DIM_TAXONOMY]
           for i in range(NUM_TAXONOMIES)]
    return vark, tax


def reference_forward_f32(x, p, bn_group):
    """Full-f32, PyTorch-style reference (standard BN formula), per group."""
    vs, ts = [], [[] for _ in range(NUM_TAXONOMIES)]
    for g in range(x.shape[0] // bn_group):
        h = x[g * bn_group:(g + 1) * bn_group]
        for li in range(1, 5):
            z = h @ p[f"w{li}"]
            mean = jnp.mean(z, axis=0, keepdims=True)
            var = jnp.mean((z - mean) ** 2, axis=0, keepdims=True)
            h = jnp.maximum((z - mean) * jax.lax.rsqrt(var + BN_EPS)
                            * p[f"g{li}"] + p[f"b{li}"], 0.0)
        vs.append(h @ p["wv"] + p["bv"])
        for i in range(NUM_TAXONOMIES):
            ts[i].append(h @ p["wt"][i] + p["bt"][i])
    return jnp.concatenate(vs, 0), [jnp.concatenate(t, 0) for t in ts]


# --------------------------------------------------------------------------
if __name__ == "__main__":
    in_dim = 32
    batch = 8          # one BN group == one logical forward

    key = jax.random.PRNGKey(0)
    k_param, k_x1, k_x2 = jax.random.split(key, 3)
    params = init_params(k_param, in_dim)
    prep = prepare_params(params, in_dim)

    # ---- Single forward (exact PyTorch semantics: BN over the whole batch).
    x1 = jax.random.normal(k_x1, (batch, in_dim), dtype=jnp.float32)
    vark, tax_heads = model_forward(x1, prep)
    vark = jax.block_until_ready(vark)
    tax_heads = [jax.block_until_ready(t) for t in tax_heads]

    assert vark.shape == (batch, VARK_DIM)
    assert len(tax_heads) == NUM_TAXONOMIES
    assert all(t.shape == (batch, DIM_TAXONOMY) for t in tax_heads)

    vark_m, tax_m = reference_forward_matched(x1, prep, batch)
    assert jnp.allclose(vark, vark_m, atol=1e-3, rtol=1e-3)
    for t, tr in zip(tax_heads, tax_m):
        assert jnp.allclose(t, tr, atol=1e-3, rtol=1e-3)

    # Loose check vs full-f32 PyTorch-style math (bf16 weight drift ~1e-2).
    vark_f, tax_f = reference_forward_f32(x1, params, batch)
    assert jnp.allclose(vark, vark_f, atol=0.2, rtol=0.2)
    for t, tr in zip(tax_heads, tax_f):
        assert jnp.allclose(t, tr, atol=0.2, rtol=0.2)

    # ---- Gridded multi-forward path: 4 independent 8-row batches in ONE
    #      pallas_call (weights stay VMEM-resident across grid steps).
    n_groups = 4
    x4 = jax.random.normal(k_x2, (n_groups * batch, in_dim), dtype=jnp.float32)
    vark4, tax4 = model_forward(x4, prep, bn_group=batch)
    vark4 = jax.block_until_ready(vark4)
    vark4_m, tax4_m = reference_forward_matched(x4, prep, batch)
    assert jnp.allclose(vark4, vark4_m, atol=1e-3, rtol=1e-3)
    for t, tr in zip(tax4, tax4_m):
        assert jnp.allclose(t, tr, atol=1e-3, rtol=1e-3)

    print("KERNEL_OK")
</pallas_src>

<mosaic_0001>
module attributes {stable_mosaic.version = 11 : i64} {
  func.func @model_kernel(%arg0: i32, %arg1: memref<8x32xf32, #tpu.memory_space<vmem>>, %arg2: memref<544x128xbf16, #tpu.memory_space<vmem>>, %arg3: memref<16x128xf32, #tpu.memory_space<vmem>>, %arg4: memref<8x128xf32, #tpu.memory_space<vmem>>) attributes {dimension_semantics = [#tpu.dimension_semantics<parallel>], iteration_bounds = array<i64: 1>, scalar_prefetch = 0 : i64, scratch_operands = 0 : i64, tpu.core_type = #tpu.core_type<tc>, window_params = [{transform_indices = @transform_0, window_bounds = array<i64: 8, 32>}, {pipeline_mode = #tpu.pipeline_mode<synchronous>, transform_indices = @transform_1, window_bounds = array<i64: 544, 128>}, {pipeline_mode = #tpu.pipeline_mode<synchronous>, transform_indices = @transform_2, window_bounds = array<i64: 16, 128>}, {transform_indices = @transform_3, window_bounds = array<i64: 8, 128>}]} {
    %c0 = arith.constant 0 : index
    %c0_0 = arith.constant 0 : index
    %0 = vector.load %arg1[%c0, %c0_0] : memref<8x32xf32, #tpu.memory_space<vmem>>, vector<8x32xf32>
    %c0_1 = arith.constant 0 : index
    %c0_2 = arith.constant 0 : index
    %1 = vector.load %arg2[%c0_1, %c0_2] : memref<544x128xbf16, #tpu.memory_space<vmem>>, vector<32x128xbf16>
    %2 = arith.truncf %0 : vector<8x32xf32> to vector<8x32xbf16>
    %cst = arith.constant dense<0.000000e+00> : vector<8x128xf32>
    %3 = tpu.matmul %2, %1, %cst {dimension_numbers = #tpu.dot_dimension_numbers<[1], [0], [0], [1], [0, 0, 1, 1], [], []>} : vector<8x32xbf16>, vector<32x128xbf16>, vector<8x128xf32> -> vector<8x128xf32>
    %c0_3 = arith.constant 0 : index
    %c0_4 = arith.constant 0 : index
    %4 = vector.load %arg3[%c0_3, %c0_4] : memref<16x128xf32, #tpu.memory_space<vmem>>, vector<1x128xf32>
    %c1 = arith.constant 1 : index
    %c0_5 = arith.constant 0 : index
    %5 = vector.load %arg3[%c1, %c0_5] : memref<16x128xf32, #tpu.memory_space<vmem>>, vector<1x128xf32>
    %cst_6 = arith.constant dense<0.000000e+00> : vector<128xf32>
    %6 = vector.multi_reduction <add>, %3, %cst_6 [0] : vector<8x128xf32> to vector<128xf32>
    %7 = vector.shape_cast %6 : vector<128xf32> to vector<1x128xf32>
    %cst_7 = arith.constant 1.250000e-01 : f32
    %8 = vector.broadcast %cst_7 : f32 to vector<1x128xf32>
    %9 = arith.mulf %7, %8 : vector<1x128xf32>
    %10 = vector.broadcast %9 : vector<1x128xf32> to vector<8x128xf32>
    %11 = arith.subf %3, %10 : vector<8x128xf32>
    %12 = arith.mulf %11, %11 : vector<8x128xf32>
    %cst_8 = arith.constant dense<0.000000e+00> : vector<128xf32>
    %13 = vector.multi_reduction <add>, %12, %cst_8 [0] : vector<8x128xf32> to vector<128xf32>
    %14 = vector.shape_cast %13 : vector<128xf32> to vector<1x128xf32>
    %cst_9 = arith.constant 1.250000e-01 : f32
    %15 = vector.broadcast %cst_9 : f32 to vector<1x128xf32>
    %16 = arith.mulf %14, %15 : vector<1x128xf32>
    %cst_10 = arith.constant 9.99999974E-6 : f32
    %17 = vector.broadcast %cst_10 : f32 to vector<1x128xf32>
    %18 = arith.addf %16, %17 : vector<1x128xf32>
    %19 = math.rsqrt %18 : vector<1x128xf32>
    %20 = arith.mulf %4, %19 : vector<1x128xf32>
    %21 = vector.broadcast %20 : vector<1x128xf32> to vector<8x128xf32>
    %22 = arith.mulf %11, %21 : vector<8x128xf32>
    %23 = vector.broadcast %5 : vector<1x128xf32> to vector<8x128xf32>
    %24 = arith.addf %22, %23 : vector<8x128xf32>
    %cst_11 = arith.constant 0.000000e+00 : f32
    %25 = vector.broadcast %cst_11 : f32 to vector<8x128xf32>
    %26 = arith.maximumf %24, %25 : vector<8x128xf32>
    %c32 = arith.constant 32 : index
    %c0_12 = arith.constant 0 : index
    %27 = vector.load %arg2[%c32, %c0_12] : memref<544x128xbf16, #tpu.memory_space<vmem>>, vector<128x128xbf16>
    %28 = arith.truncf %26 : vector<8x128xf32> to vector<8x128xbf16>
    %cst_13 = arith.constant dense<0.000000e+00> : vector<8x128xf32>
    %29 = tpu.matmul %28, %27, %cst_13 {dimension_numbers = #tpu.dot_dimension_numbers<[1], [0], [0], [1], [0, 0, 1, 1], [], []>} : vector<8x128xbf16>, vector<128x128xbf16>, vector<8x128xf32> -> vector<8x128xf32>
    %c2 = arith.constant 2 : index
    %c0_14 = arith.constant 0 : index
    %30 = vector.load %arg3[%c2, %c0_14] : memref<16x128xf32, #tpu.memory_space<vmem>>, vector<1x128xf32>
    %c3 = arith.constant 3 : index
    %c0_15 = arith.constant 0 : index
    %31 = vector.load %arg3[%c3, %c0_15] : memref<16x128xf32, #tpu.memory_space<vmem>>, vector<1x128xf32>
    %cst_16 = arith.constant dense<0.000000e+00> : vector<128xf32>
    %32 = vector.multi_reduction <add>, %29, %cst_16 [0] : vector<8x128xf32> to vector<128xf32>
    %33 = vector.shape_cast %32 : vector<128xf32> to vector<1x128xf32>
    %cst_17 = arith.constant 1.250000e-01 : f32
    %34 = vector.broadcast %cst_17 : f32 to vector<1x128xf32>
    %35 = arith.mulf %33, %34 : vector<1x128xf32>
    %36 = vector.broadcast %35 : vector<1x128xf32> to vector<8x128xf32>
    %37 = arith.subf %29, %36 : vector<8x128xf32>
    %38 = arith.mulf %37, %37 : vector<8x128xf32>
    %cst_18 = arith.constant dense<0.000000e+00> : vector<128xf32>
    %39 = vector.multi_reduction <add>, %38, %cst_18 [0] : vector<8x128xf32> to vector<128xf32>
    %40 = vector.shape_cast %39 : vector<128xf32> to vector<1x128xf32>
    %cst_19 = arith.constant 1.250000e-01 : f32
    %41 = vector.broadcast %cst_19 : f32 to vector<1x128xf32>
    %42 = arith.mulf %40, %41 : vector<1x128xf32>
    %cst_20 = arith.constant 9.99999974E-6 : f32
    %43 = vector.broadcast %cst_20 : f32 to vector<1x128xf32>
    %44 = arith.addf %42, %43 : vector<1x128xf32>
    %45 = math.rsqrt %44 : vector<1x128xf32>
    %46 = arith.mulf %30, %45 : vector<1x128xf32>
    %47 = vector.broadcast %46 : vector<1x128xf32> to vector<8x128xf32>
    %48 = arith.mulf %37, %47 : vector<8x128xf32>
    %49 = vector.broadcast %31 : vector<1x128xf32> to vector<8x128xf32>
    %50 = arith.addf %48, %49 : vector<8x128xf32>
    %cst_21 = arith.constant 0.000000e+00 : f32
    %51 = vector.broadcast %cst_21 : f32 to vector<8x128xf32>
    %52 = arith.maximumf %50, %51 : vector<8x128xf32>
    %c160 = arith.constant 160 : index
    %c0_22 = arith.constant 0 : index
    %53 = vector.load %arg2[%c160, %c0_22] : memref<544x128xbf16, #tpu.memory_space<vmem>>, vector<128x128xbf16>
    %54 = arith.truncf %52 : vector<8x128xf32> to vector<8x128xbf16>
    %cst_23 = arith.constant dense<0.000000e+00> : vector<8x128xf32>
    %55 = tpu.matmul %54, %53, %cst_23 {dimension_numbers = #tpu.dot_dimension_numbers<[1], [0], [0], [1], [0, 0, 1, 1], [], []>} : vector<8x128xbf16>, vector<128x128xbf16>, vector<8x128xf32> -> vector<8x128xf32>
    %c4 = arith.constant 4 : index
    %c0_24 = arith.constant 0 : index
    %56 = vector.load %arg3[%c4, %c0_24] : memref<16x128xf32, #tpu.memory_space<vmem>>, vector<1x128xf32>
    %c5 = arith.constant 5 : index
    %c0_25 = arith.constant 0 : index
    %57 = vector.load %arg3[%c5, %c0_25] : memref<16x128xf32, #tpu.memory_space<vmem>>, vector<1x128xf32>
    %cst_26 = arith.constant dense<0.000000e+00> : vector<128xf32>
    %58 = vector.multi_reduction <add>, %55, %cst_26 [0] : vector<8x128xf32> to vector<128xf32>
    %59 = vector.shape_cast %58 : vector<128xf32> to vector<1x128xf32>
    %cst_27 = arith.constant 1.250000e-01 : f32
    %60 = vector.broadcast %cst_27 : f32 to vector<1x128xf32>
    %61 = arith.mulf %59, %60 : vector<1x128xf32>
    %62 = vector.broadcast %61 : vector<1x128xf32> to vector<8x128xf32>
    %63 = arith.subf %55, %62 : vector<8x128xf32>
    %64 = arith.mulf %63, %63 : vector<8x128xf32>
    %cst_28 = arith.constant dense<0.000000e+00> : vector<128xf32>
    %65 = vector.multi_reduction <add>, %64, %cst_28 [0] : vector<8x128xf32> to vector<128xf32>
    %66 = vector.shape_cast %65 : vector<128xf32> to vector<1x128xf32>
    %cst_29 = arith.constant 1.250000e-01 : f32
    %67 = vector.broadcast %cst_29 : f32 to vector<1x128xf32>
    %68 = arith.mulf %66, %67 : vector<1x128xf32>
    %cst_30 = arith.constant 9.99999974E-6 : f32
    %69 = vector.broadcast %cst_30 : f32 to vector<1x128xf32>
    %70 = arith.addf %68, %69 : vector<1x128xf32>
    %71 = math.rsqrt %70 : vector<1x128xf32>
    %72 = arith.mulf %56, %71 : vector<1x128xf32>
    %73 = vector.broadcast %72 : vector<1x128xf32> to vector<8x128xf32>
    %74 = arith.mulf %63, %73 : vector<8x128xf32>
    %75 = vector.broadcast %57 : vector<1x128xf32> to vector<8x128xf32>
    %76 = arith.addf %74, %75 : vector<8x128xf32>
    %cst_31 = arith.constant 0.000000e+00 : f32
    %77 = vector.broadcast %cst_31 : f32 to vector<8x128xf32>
    %78 = arith.maximumf %76, %77 : vector<8x128xf32>
    %c288 = arith.constant 288 : index
    %c0_32 = arith.constant 0 : index
    %79 = vector.load %arg2[%c288, %c0_32] : memref<544x128xbf16, #tpu.memory_space<vmem>>, vector<128x128xbf16>
    %80 = arith.truncf %78 : vector<8x128xf32> to vector<8x128xbf16>
    %cst_33 = arith.constant dense<0.000000e+00> : vector<8x128xf32>
    %81 = tpu.matmul %80, %79, %cst_33 {dimension_numbers = #tpu.dot_dimension_numbers<[1], [0], [0], [1], [0, 0, 1, 1], [], []>} : vector<8x128xbf16>, vector<128x128xbf16>, vector<8x128xf32> -> vector<8x128xf32>
    %c6 = arith.constant 6 : index
    %c0_34 = arith.constant 0 : index
    %82 = vector.load %arg3[%c6, %c0_34] : memref<16x128xf32, #tpu.memory_space<vmem>>, vector<1x128xf32>
    %c7 = arith.constant 7 : index
    %c0_35 = arith.constant 0 : index
    %83 = vector.load %arg3[%c7, %c0_35] : memref<16x128xf32, #tpu.memory_space<vmem>>, vector<1x128xf32>
    %cst_36 = arith.constant dense<0.000000e+00> : vector<128xf32>
    %84 = vector.multi_reduction <add>, %81, %cst_36 [0] : vector<8x128xf32> to vector<128xf32>
    %85 = vector.shape_cast %84 : vector<128xf32> to vector<1x128xf32>
    %cst_37 = arith.constant 1.250000e-01 : f32
    %86 = vector.broadcast %cst_37 : f32 to vector<1x128xf32>
    %87 = arith.mulf %85, %86 : vector<1x128xf32>
    %88 = vector.broadcast %87 : vector<1x128xf32> to vector<8x128xf32>
    %89 = arith.subf %81, %88 : vector<8x128xf32>
    %90 = arith.mulf %89, %89 : vector<8x128xf32>
    %cst_38 = arith.constant dense<0.000000e+00> : vector<128xf32>
    %91 = vector.multi_reduction <add>, %90, %cst_38 [0] : vector<8x128xf32> to vector<128xf32>
    %92 = vector.shape_cast %91 : vector<128xf32> to vector<1x128xf32>
    %cst_39 = arith.constant 1.250000e-01 : f32
    %93 = vector.broadcast %cst_39 : f32 to vector<1x128xf32>
    %94 = arith.mulf %92, %93 : vector<1x128xf32>
    %cst_40 = arith.constant 9.99999974E-6 : f32
    %95 = vector.broadcast %cst_40 : f32 to vector<1x128xf32>
    %96 = arith.addf %94, %95 : vector<1x128xf32>
    %97 = math.rsqrt %96 : vector<1x128xf32>
    %98 = arith.mulf %82, %97 : vector<1x128xf32>
    %99 = vector.broadcast %98 : vector<1x128xf32> to vector<8x128xf32>
    %100 = arith.mulf %89, %99 : vector<8x128xf32>
    %101 = vector.broadcast %83 : vector<1x128xf32> to vector<8x128xf32>
    %102 = arith.addf %100, %101 : vector<8x128xf32>
    %cst_41 = arith.constant 0.000000e+00 : f32
    %103 = vector.broadcast %cst_41 : f32 to vector<8x128xf32>
    %104 = arith.maximumf %102, %103 : vector<8x128xf32>
    %c416 = arith.constant 416 : index
    %c0_42 = arith.constant 0 : index
    %105 = vector.load %arg2[%c416, %c0_42] : memref<544x128xbf16, #tpu.memory_space<vmem>>, vector<128x128xbf16>
    %c8 = arith.constant 8 : index
    %c0_43 = arith.constant 0 : index
    %106 = vector.load %arg3[%c8, %c0_43] : memref<16x128xf32, #tpu.memory_space<vmem>>, vector<1x128xf32>
    %107 = arith.truncf %104 : vector<8x128xf32> to vector<8x128xbf16>
    %cst_44 = arith.constant dense<0.000000e+00> : vector<8x128xf32>
    %108 = tpu.matmul %107, %105, %cst_44 {dimension_numbers = #tpu.dot_dimension_numbers<[1], [0], [0], [1], [0, 0, 1, 1], [], []>} : vector<8x128xbf16>, vector<128x128xbf16>, vector<8x128xf32> -> vector<8x128xf32>
    %109 = vector.broadcast %106 : vector<1x128xf32> to vector<8x128xf32>
    %110 = arith.addf %108, %109 : vector<8x128xf32>
    %c0_45 = arith.constant 0 : index
    %c0_46 = arith.constant 0 : index
    %111 = vector.load %arg4[%c0_45, %c0_46] : memref<8x128xf32, #tpu.memory_space<vmem>>, vector<8x128xf32>
    tpu.vector_store %arg4[%c0_45, %c0_46], %110 {strides = array<i32>} : memref<8x128xf32, #tpu.memory_space<vmem>>, vector<8x128xf32>,
    return
  }
  func.func @transform_0(%arg0: i32) -> (i32, i32) {
    %c0_i32 = arith.constant 0 : i32
    %c0_i32_0 = arith.constant 0 : i32
    return %arg0, %c0_i32 : i32, i32
  }
  func.func @transform_1(%arg0: i32) -> (i32, i32) {
    %c0_i32 = arith.constant 0 : i32
    %c0_i32_0 = arith.constant 0 : i32
    %c0_i32_1 = arith.constant 0 : i32
    return %c0_i32, %c0_i32_0 : i32, i32
  }
  func.func @transform_2(%arg0: i32) -> (i32, i32) {
    %c0_i32 = arith.constant 0 : i32
    %c0_i32_0 = arith.constant 0 : i32
    %c0_i32_1 = arith.constant 0 : i32
    return %c0_i32, %c0_i32_0 : i32, i32
  }
  func.func @transform_3(%arg0: i32) -> (i32, i32) {
    %c0_i32 = arith.constant 0 : i32
    %c0_i32_0 = arith.constant 0 : i32
    return %arg0, %c0_i32 : i32, i32
  }
}

</mosaic_0001>

<llo_original>
// kernel: _forward_padded.1
$region0: #{_forward_padded.1}
  #allocation0 [shape = 'u32[]', space=smem, size = 0x4, offset = 0x4, fixed_abs, tag = 'smem constant byte address 0x4 - core index']
  #allocation1 [shape = 'u32[144,128]{1,0:T(1,128)}', space=vmem, size = 0x12000, scoped, tag = 'internal scratch']
  %s0 = inlined_call_operand.hbm [shape: f32[8,32], index: 0, kind: input, shape index: {}]
  %s1 = inlined_call_operand.hbm [shape: bf16[544,128], index: 1, kind: input, shape index: {}]
  %s2 = inlined_call_operand.hbm [shape: f32[16,128], index: 2, kind: input, shape index: {}]
  %s3 = inlined_call_operand.hbm [shape: f32[8,128], index: 3, kind: output, shape index: {}]
  %s4 = sld [smem:[#allocation0]]
  $region34: #{_forward_padded.1} parent=0
    _
  %s6 = ssub.s32 1, %s4
  %s7 = scalar_select 0, %s6, %s4
  $region1: #{_forward_padded.1} parent=0
    #allocation2 [shape = 'u8[4096]{0}', space=vmem, size = 0x1000, scoped, tag = 'input window, operand 0, single buffered']
    #allocation3 [shape = 's32[1]{0}', space=sflag, size = 0x4, scoped, tag = 'scoped memory for _forward_padded.1']
    #allocation4 [shape = 's32[1]{0}', space=sflag, size = 0x4, scoped, tag = 'scoped memory for _forward_padded.1']
    #allocation5 [shape = 'u8[139264]{0}', space=vmem, size = 0x22000, scoped, tag = 'input window, operand 1, single buffered']
    #allocation6 [shape = 's32[1]{0}', space=sflag, size = 0x4, scoped, tag = 'scoped memory for _forward_padded.1']
    #allocation7 [shape = 'u8[8192]{0}', space=vmem, size = 0x2000, scoped, tag = 'input window, operand 2, single buffered']
    #allocation8 [shape = 'u8[4096]{0}', space=vmem, size = 0x1000, scoped, tag = 'output window, operand 0, single buffered']
    %8 = vsyncpa [#allocation3], 0
    %9 = vsyncpa [#allocation6], 0
    %10 = vsyncpa [#allocation4], 0
    // Predicated region
    $region2: #{_forward_padded.1} parent=1 // pred_check
      _
    $region3: #{_forward_padded.1} parent=1 // pred_check_branch
      %12 = sbr.rel (0) target = $region5
    $region4: #{_forward_padded.1} parent=1 // pred_region
      %s14 = ssub.s32 128, 128
      %15 = vsyncadd [#allocation3], %s14
      %s17 = sshll.u32 [#allocation2], 4
      %s18 = int_to_ptr.vmem [resolvable:$true] %s17
      %20 = dma.hbm_to_vmem [thread:$0]  %s0, 128, %s18, [#allocation3]
    $region5: #{_forward_padded.1} parent=1 // pred_fallthru
      _
    // Predicated region
    $region6: #{_forward_padded.1} parent=1 // pred_check
      _
    $region7: #{_forward_padded.1} parent=1 // pred_check_branch
      %22 = sbr.rel (0) target = $region9
    $region8: #{_forward_padded.1} parent=1 // pred_region
      %s24 = ssub.s32 4352, 4352
      %25 = vsyncadd [#allocation6], %s24
      %s26 = sshll.u32 [#allocation5], 4
      %s27 = int_to_ptr.vmem [resolvable:$true] %s26
      %32 = dma.hbm_to_vmem [thread:$0]  %s1, 4352, %s27, [#allocation6], 64, 64, 4
    $region9: #{_forward_padded.1} parent=1 // pred_fallthru
      _
    // Predicated region
    $region10: #{_forward_padded.1} parent=1 // pred_check
      _
    $region11: #{_forward_padded.1} parent=1 // pred_check_branch
      %34 = sbr.rel (0) target = $region13
    $region12: #{_forward_padded.1} parent=1 // pred_region
      %s36 = ssub.s32 256, 256
      %37 = vsyncadd [#allocation6], %s36
      %s38 = sshll.u32 [#allocation7], 4
      %s39 = int_to_ptr.vmem [resolvable:$true] %s38
      %44 = dma.hbm_to_vmem [thread:$0]  %s2, 256, %s39, [#allocation6], 128, 128, 8
    $region13: #{_forward_padded.1} parent=1 // pred_fallthru
      _
    // Predicated region
    $region14: #{_forward_padded.1} parent=1 // pred_check
      _
    $region15: #{_forward_padded.1} parent=1 // pred_check_branch
      %46 = sbr.rel (0) target = $region17
    $region16: #{_forward_padded.1} parent=1 // pred_region
      %47 = dma.done [#allocation3], 128
    $region17: #{_forward_padded.1} parent=1 // pred_fallthru
      _
    // Predicated region
    $region18: #{_forward_padded.1} parent=1 // pred_check
      _
    $region19: #{_forward_padded.1} parent=1 // pred_check_branch
      %49 = sbr.rel (0) target = $region21
    $region20: #{_forward_padded.1} parent=1 // pred_region
      %50 = dma.done [#allocation6], 4352
    $region21: #{_forward_padded.1} parent=1 // pred_fallthru
      _
    // Predicated region
    $region22: #{_forward_padded.1} parent=1 // pred_check
      _
    $region23: #{_forward_padded.1} parent=1 // pred_check_branch
      %52 = sbr.rel (0) target = $region25
    $region24: #{_forward_padded.1} parent=1 // pred_region
      %53 = dma.done [#allocation6], 256
    $region25: #{_forward_padded.1} parent=1 // pred_fallthru
      _
    %v55 = vld [vmem:[#allocation2] sm:$0xff]
    %v56 = vld [vmem:[#allocation5] sm:$0xf]
    %v57 = vld [vmem:[#allocation5 + $0x4] sm:$0xf]
    %v58 = vld [vmem:[#allocation5 + $0x8] sm:$0xf]
    %v59 = vld [vmem:[#allocation5 + $0xc] sm:$0xf]
    %v60 = vpack.c.bf16 %v55, %v55
    %v65 = vunpack.c.l.b16 %v56
    %v66 = vunpack.c.l.b16 %v57
    %v67 = vunpack.c.l.b16 %v58
    %v68 = vunpack.c.l.b16 %v59
    %v69 = vpack.c.b16 %v66, %v65
    %v70 = vpack.c.b16 %v68, %v67
    %vm73 = vcmask 261120
    %v75 = vsel %vm73, %v60, 0
    %77 = vmatprep.subr.bf16.mxu0 0
    %78 = vmatpush1.bf16.msra.mxu0 %v69
    %79 = vmatprep.subr.bf16.mxu0 0
    %80 = vmatpush1.bf16.msra.mxu0 %v70
    %81 = vmatprep.subr.bf16.mxu0 0
    %82 = vmatpush1.bf16.msra.mxu0 0
    %83 = vmatprep.subr.bf16.mxu0 0
    %84 = vmatpush1.bf16.msra.mxu0 0
    %85 = vmatprep.subr.bf16.mxu0 0
    %86 = vmatpush1.bf16.msra.mxu0 0
    %87 = vmatprep.subr.bf16.mxu0 0
    %88 = vmatpush1.bf16.msra.mxu0 0
    %89 = vmatprep.subr.bf16.mxu0 0
    %90 = vmatpush1.bf16.msra.mxu0 0
    %91 = vmatprep.subr.bf16.mxu0 0
    %92 = vmatpush1.bf16.msra.mxu0 0
    %93 = vmatprep.subr.bf16.mxu0 0
    %94 = vmatpush1.bf16.msra.mxu0 0
    %95 = vmatprep.subr.bf16.mxu0 0
    %96 = vmatpush1.bf16.msra.mxu0 0
    %97 = vmatprep.subr.bf16.mxu0 0
    %98 = vmatpush1.bf16.msra.mxu0 0
    %99 = vmatprep.subr.bf16.mxu0 0
    %100 = vmatpush1.bf16.msra.mxu0 0
    %101 = vmatprep.subr.bf16.mxu0 0
    %102 = vmatpush1.bf16.msra.mxu0 0
    %103 = vmatprep.subr.bf16.mxu0 0
    %104 = vmatpush1.bf16.msra.mxu0 0
    %105 = vmatprep.subr.bf16.mxu0 0
    %106 = vmatpush1.bf16.msra.mxu0 0
    %107 = vmatprep.subr.bf16.mxu0 0
    %108 = vmatpush1.bf16.msra.mxu0 0
    %109 = vmatprep.mubr.bf16.mxu0 0
    %110 = vmatmul.mubr.bf16.gmra.mrb[0].mxu0 %v75
    %v111 = vpop.f32.mrb[0].mxu0
    %v112 = vadd.f32 0.0, %v111
    %v113 = vpop.f32.mrb[0].mxu0
    %v114 = vpop.f32.mrb[0].mxu0
    %v115 = vpop.f32.mrb[0].mxu0
    %116 = vdwg.mxu0
    %v117 = vld [vmem:[#allocation7] sm:$0x1]
    %v118 = vld [vmem:[#allocation7 + $0x1] sm:$0x1]
    %v119 = vrot.slane %v112, 4
    %v120 = vadd.f32 %v112, %v119
    %v121 = vrot.slane %v120, 2
    %v122 = vadd.f32 %v120, %v121
    %v123 = vrot.slane %v122, 1
    %v124 = vadd.f32 %v122, %v123
    %v125 = vmul.f32 %v124, 0.125
    %v126 = vsub.f32 %v112, %v125
    %v127 = vmul.f32 %v126, %v126
    %v128 = vrot.slane %v127, 4
    %v129 = vadd.f32 %v127, %v128
    %v130 = vrot.slane %v129, 2
    %v131 = vadd.f32 %v129, %v130
    %v132 = vrot.slane %v131, 1
    %v133 = vadd.f32 %v131, %v132
    %v134 = vmul.f32 %v133, 0.125
    %v135 = vadd.f32 %v134, 1e-05
    %v136 = vrsqrt.pop %v135
    %v137 = vmul.f32 %v117, %v136
    %v138 = vlaneseq
    %v139 = vshrl.u32 %v138, 7
    %v140 = vsub.s32 0, %v139
    %v141 = vrot.slane %v137, %v140
    %v142 = vmul.f32 %v126, %v141
    %v143 = vlaneseq
    %v144 = vshrl.u32 %v143, 7
    %v145 = vsub.s32 0, %v144
    %v146 = vrot.slane %v118, %v145
    %v147 = vadd.f32 %v142, %v146
    %v148 = vmax.f32 %v147, 0.0
    %v149 = vld [vmem:[#allocation5 + $0x10] sm:$0xf]
    %v150 = vld [vmem:[#allocation5 + $0x14] sm:$0xf]
    %v151 = vld [vmem:[#allocation5 + $0x18] sm:$0xf]
    %v152 = vld [vmem:[#allocation5 + $0x1c] sm:$0xf]
    %v153 = vld [vmem:[#allocation5 + $0x20] sm:$0xf]
    %v154 = vld [vmem:[#allocation5 + $0x24] sm:$0xf]
    %v155 = vld [vmem:[#allocation5 + $0x28] sm:$0xf]
    %v156 = vld [vmem:[#allocation5 + $0x2c] sm:$0xf]
    %v157 = vld [vmem:[#allocation5 + $0x30] sm:$0xf]
    %v158 = vld [vmem:[#allocation5 + $0x34] sm:$0xf]
    %v159 = vld [vmem:[#allocation5 + $0x38] sm:$0xf]
    %v160 = vld [vmem:[#allocation5 + $0x3c] sm:$0xf]
    %v161 = vld [vmem:[#allocation5 + $0x40] sm:$0xf]
    %v162 = vld [vmem:[#allocation5 + $0x44] sm:$0xf]
    %v163 = vld [vmem:[#allocation5 + $0x48] sm:$0xf]
    %v164 = vld [vmem:[#allocation5 + $0x4c] sm:$0xf]
    %v165 = vpack.c.bf16 %v148, %v148
    %v182 = vunpack.c.l.b16 %v149
    %v183 = vunpack.c.l.b16 %v150
    %v184 = vunpack.c.l.b16 %v151
    %v185 = vunpack.c.l.b16 %v152
    %v186 = vunpack.c.l.b16 %v153
    %v187 = vunpack.c.l.b16 %v154
    %v188 = vunpack.c.l.b16 %v155
    %v189 = vunpack.c.l.b16 %v156
    %v190 = vunpack.c.l.b16 %v157
    %v191 = vunpack.c.l.b16 %v158
    %v192 = vunpack.c.l.b16 %v159
    %v193 = vunpack.c.l.b16 %v160
    %v194 = vunpack.c.l.b16 %v161
    %v195 = vunpack.c.l.b16 %v162
    %v196 = vunpack.c.l.b16 %v163
    %v197 = vunpack.c.l.b16 %v164
    %v198 = vpack.c.b16 %v183, %v182
    %v199 = vpack.c.b16 %v185, %v184
    %v200 = vpack.c.b16 %v187, %v186
    %v201 = vpack.c.b16 %v189, %v188
    %v202 = vpack.c.b16 %v191, %v190
    %v203 = vpack.c.b16 %v193, %v192
    %v204 = vpack.c.b16 %v195, %v194
    %v205 = vpack.c.b16 %v197, %v196
    %214 = vmatprep.subr.bf16.mxu0 0
    %215 = vmatpush1.bf16.msra.mxu0 %v198
    %216 = vmatprep.subr.bf16.mxu0 0
    %217 = vmatpush1.bf16.msra.mxu0 %v199
    %218 = vmatprep.subr.bf16.mxu0 0
    %219 = vmatpush1.bf16.msra.mxu0 %v200
    %220 = vmatprep.subr.bf16.mxu0 0
    %221 = vmatpush1.bf16.msra.mxu0 %v201
    %222 = vmatprep.subr.bf16.mxu0 0
    %223 = vmatpush1.bf16.msra.mxu0 %v202
    %224 = vmatprep.subr.bf16.mxu0 0
    %225 = vmatpush1.bf16.msra.mxu0 %v203
    %226 = vmatprep.subr.bf16.mxu0 0
    %227 = vmatpush1.bf16.msra.mxu0 %v204
    %228 = vmatprep.subr.bf16.mxu0 0
    %229 = vmatpush1.bf16.msra.mxu0 %v205
    %230 = vmatprep.subr.bf16.mxu0 0
    %231 = vmatpush1.bf16.msra.mxu0 0
    %232 = vmatprep.subr.bf16.mxu0 0
    %233 = vmatpush1.bf16.msra.mxu0 0
    %234 = vmatprep.subr.bf16.mxu0 0
    %235 = vmatpush1.bf16.msra.mxu0 0
    %236 = vmatprep.subr.bf16.mxu0 0
    %237 = vmatpush1.bf16.msra.mxu0 0
    %238 = vmatprep.subr.bf16.mxu0 0
    %239 = vmatpush1.bf16.msra.mxu0 0
    %240 = vmatprep.subr.bf16.mxu0 0
    %241 = vmatpush1.bf16.msra.mxu0 0
    %242 = vmatprep.subr.bf16.mxu0 0
    %243 = vmatpush1.bf16.msra.mxu0 0
    %244 = vmatprep.subr.bf16.mxu0 0
    %245 = vmatpush1.bf16.msra.mxu0 0
    %246 = vmatprep.mubr.bf16.mxu0 0
    %247 = vmatmul.mubr.bf16.gmra.mrb[0].mxu0 %v165
    %v248 = vpop.f32.mrb[0].mxu0
    %v249 = vadd.f32 0.0, %v248
    %v250 = vpop.f32.mrb[0].mxu0
    %v251 = vpop.f32.mrb[0].mxu0
    %v252 = vpop.f32.mrb[0].mxu0
    %253 = vdwg.mxu0
    %v254 = vld [vmem:[#allocation7 + $0x2] sm:$0x1]
    %v255 = vld [vmem:[#allocation7 + $0x3] sm:$0x1]
    %v256 = vrot.slane %v249, 4
    %v257 = vadd.f32 %v249, %v256
    %v258 = vrot.slane %v257, 2
    %v259 = vadd.f32 %v257, %v258
    %v260 = vrot.slane %v259, 1
    %v261 = vadd.f32 %v259, %v260
    %v262 = vmul.f32 %v261, 0.125
    %v263 = vsub.f32 %v249, %v262
    %v264 = vmul.f32 %v263, %v263
    %v265 = vrot.slane %v264, 4
    %v266 = vadd.f32 %v264, %v265
    %v267 = vrot.slane %v266, 2
    %v268 = vadd.f32 %v266, %v267
    %v269 = vrot.slane %v268, 1
    %v270 = vadd.f32 %v268, %v269
    %v271 = vmul.f32 %v270, 0.125
    %v272 = vadd.f32 %v271, 1e-05
    %v273 = vrsqrt.pop %v272
    %v274 = vmul.f32 %v254, %v273
    %v275 = vlaneseq
    %v276 = vshrl.u32 %v275, 7
    %v277 = vsub.s32 0, %v276
    %v278 = vrot.slane %v274, %v277
    %v279 = vmul.f32 %v263, %v278
    %v280 = vlaneseq
    %v281 = vshrl.u32 %v280, 7
    %v282 = vsub.s32 0, %v281
    %v283 = vrot.slane %v255, %v282
    %v284 = vadd.f32 %v279, %v283
    %v285 = vmax.f32 %v284, 0.0
    %v286 = vld [vmem:[#allocation5 + $0x50] sm:$0xf]
    %v287 = vld [vmem:[#allocation5 + $0x54] sm:$0xf]
    %v288 = vld [vmem:[#allocation5 + $0x58] sm:$0xf]
    %v289 = vld [vmem:[#allocation5 + $0x5c] sm:$0xf]
    %v290 = vld [vmem:[#allocation5 + $0x60] sm:$0xf]
    %v291 = vld [vmem:[#allocation5 + $0x64] sm:$0xf]
    %v292 = vld [vmem:[#allocation5 + $0x68] sm:$0xf]
    %v293 = vld [vmem:[#allocation5 + $0x6c] sm:$0xf]
    %v294 = vld [vmem:[#allocation5 + $0x70] sm:$0xf]
    %v295 = vld [vmem:[#allocation5 + $0x74] sm:$0xf]
    %v296 = vld [vmem:[#allocation5 + $0x78] sm:$0xf]
    %v297 = vld [vmem:[#allocation5 + $0x7c] sm:$0xf]
    %v298 = vld [vmem:[#allocation5 + $0x80] sm:$0xf]
    %v299 = vld [vmem:[#allocation5 + $0x84] sm:$0xf]
    %v300 = vld [vmem:[#allocation5 + $0x88] sm:$0xf]
    %v301 = vld [vmem:[#allocation5 + $0x8c] sm:$0xf]
    %v302 = vpack.c.bf16 %v285, %v285
    %v319 = vunpack.c.l.b16 %v286
    %v320 = vunpack.c.l.b16 %v287
    %v321 = vunpack.c.l.b16 %v288
    %v322 = vunpack.c.l.b16 %v289
    %v323 = vunpack.c.l.b16 %v290
    %v324 = vunpack.c.l.b16 %v291
    %v325 = vunpack.c.l.b16 %v292
    %v326 = vunpack.c.l.b16 %v293
    %v327 = vunpack.c.l.b16 %v294
    %v328 = vunpack.c.l.b16 %v295
    %v329 = vunpack.c.l.b16 %v296
    %v330 = vunpack.c.l.b16 %v297
    %v331 = vunpack.c.l.b16 %v298
    %v332 = vunpack.c.l.b16 %v299
    %v333 = vunpack.c.l.b16 %v300
    %v334 = vunpack.c.l.b16 %v301
    %v335 = vpack.c.b16 %v320, %v319
    %v336 = vpack.c.b16 %v322, %v321
    %v337 = vpack.c.b16 %v324, %v323
    %v338 = vpack.c.b16 %v326, %v325
    %v339 = vpack.c.b16 %v328, %v327
    %v340 = vpack.c.b16 %v330, %v329
    %v341 = vpack.c.b16 %v332, %v331
    %v342 = vpack.c.b16 %v334, %v333
    %351 = vmatprep.subr.bf16.mxu0 0
    %352 = vmatpush1.bf16.msra.mxu0 %v335
    %353 = vmatprep.subr.bf16.mxu0 0
    %354 = vmatpush1.bf16.msra.mxu0 %v336
    %355 = vmatprep.subr.bf16.mxu0 0
    %356 = vmatpush1.bf16.msra.mxu0 %v337
    %357 = vmatprep.subr.bf16.mxu0 0
    %358 = vmatpush1.bf16.msra.mxu0 %v338
    %359 = vmatprep.subr.bf16.mxu0 0
    %360 = vmatpush1.bf16.msra.mxu0 %v339
    %361 = vmatprep.subr.bf16.mxu0 0
    %362 = vmatpush1.bf16.msra.mxu0 %v340
    %363 = vmatprep.subr.bf16.mxu0 0
    %364 = vmatpush1.bf16.msra.mxu0 %v341
    %365 = vmatprep.subr.bf16.mxu0 0
    %366 = vmatpush1.bf16.msra.mxu0 %v342
    %367 = vmatprep.subr.bf16.mxu0 0
    %368 = vmatpush1.bf16.msra.mxu0 0
    %369 = vmatprep.subr.bf16.mxu0 0
    %370 = vmatpush1.bf16.msra.mxu0 0
    %371 = vmatprep.subr.bf16.mxu0 0
    %372 = vmatpush1.bf16.msra.mxu0 0
    %373 = vmatprep.subr.bf16.mxu0 0
    %374 = vmatpush1.bf16.msra.mxu0 0
    %375 = vmatprep.subr.bf16.mxu0 0
    %376 = vmatpush1.bf16.msra.mxu0 0
    %377 = vmatprep.subr.bf16.mxu0 0
    %378 = vmatpush1.bf16.msra.mxu0 0
    %379 = vmatprep.subr.bf16.mxu0 0
    %380 = vmatpush1.bf16.msra.mxu0 0
    %381 = vmatprep.subr.bf16.mxu0 0
    %382 = vmatpush1.bf16.msra.mxu0 0
    %383 = vmatprep.mubr.bf16.mxu0 0
    %384 = vmatmul.mubr.bf16.gmra.mrb[0].mxu0 %v302
    %v385 = vpop.f32.mrb[0].mxu0
    %v386 = vadd.f32 0.0, %v385
    %v387 = vpop.f32.mrb[0].mxu0
    %v388 = vpop.f32.mrb[0].mxu0
    %v389 = vpop.f32.mrb[0].mxu0
    %390 = vdwg.mxu0
    %v391 = vld [vmem:[#allocation7 + $0x4] sm:$0x1]
    %v392 = vld [vmem:[#allocation7 + $0x5] sm:$0x1]
    %v393 = vrot.slane %v386, 4
    %v394 = vadd.f32 %v386, %v393
    %v395 = vrot.slane %v394, 2
    %v396 = vadd.f32 %v394, %v395
    %v397 = vrot.slane %v396, 1
    %v398 = vadd.f32 %v396, %v397
    %v399 = vmul.f32 %v398, 0.125
    %v400 = vsub.f32 %v386, %v399
    %v401 = vmul.f32 %v400, %v400
    %v402 = vrot.slane %v401, 4
    %v403 = vadd.f32 %v401, %v402
    %v404 = vrot.slane %v403, 2
    %v405 = vadd.f32 %v403, %v404
    %v406 = vrot.slane %v405, 1
    %v407 = vadd.f32 %v405, %v406
    %v408 = vmul.f32 %v407, 0.125
    %v409 = vadd.f32 %v408, 1e-05
    %v410 = vrsqrt.pop %v409
    %v411 = vmul.f32 %v391, %v410
    %v412 = vlaneseq
    %v413 = vshrl.u32 %v412, 7
    %v414 = vsub.s32 0, %v413
    %v415 = vrot.slane %v411, %v414
    %v416 = vmul.f32 %v400, %v415
    %v417 = vlaneseq
    %v418 = vshrl.u32 %v417, 7
    %v419 = vsub.s32 0, %v418
    %v420 = vrot.slane %v392, %v419
    %v421 = vadd.f32 %v416, %v420
    %v422 = vmax.f32 %v421, 0.0
    %v423 = vld [vmem:[#allocation5 + $0x90] sm:$0xf]
    %v424 = vld [vmem:[#allocation5 + $0x94] sm:$0xf]
    %v425 = vld [vmem:[#allocation5 + $0x98] sm:$0xf]
    %v426 = vld [vmem:[#allocation5 + $0x9c] sm:$0xf]
    %v427 = vld [vmem:[#allocation5 + $0xa0] sm:$0xf]
    %v428 = vld [vmem:[#allocation5 + $0xa4] sm:$0xf]
    %v429 = vld [vmem:[#allocation5 + $0xa8] sm:$0xf]
    %v430 = vld [vmem:[#allocation5 + $0xac] sm:$0xf]
    %v431 = vld [vmem:[#allocation5 + $0xb0] sm:$0xf]
    %v432 = vld [vmem:[#allocation5 + $0xb4] sm:$0xf]
    %v433 = vld [vmem:[#allocation5 + $0xb8] sm:$0xf]
    %v434 = vld [vmem:[#allocation5 + $0xbc] sm:$0xf]
    %v435 = vld [vmem:[#allocation5 + $0xc0] sm:$0xf]
    %v436 = vld [vmem:[#allocation5 + $0xc4] sm:$0xf]
    %v437 = vld [vmem:[#allocation5 + $0xc8] sm:$0xf]
    %v438 = vld [vmem:[#allocation5 + $0xcc] sm:$0xf]
    %v439 = vpack.c.bf16 %v422, %v422
    %v456 = vunpack.c.l.b16 %v423
    %v457 = vunpack.c.l.b16 %v424
    %v458 = vunpack.c.l.b16 %v425
    %v459 = vunpack.c.l.b16 %v426
    %v460 = vunpack.c.l.b16 %v427
    %v461 = vunpack.c.l.b16 %v428
    %v462 = vunpack.c.l.b16 %v429
    %v463 = vunpack.c.l.b16 %v430
    %v464 = vunpack.c.l.b16 %v431
    %v465 = vunpack.c.l.b16 %v432
    %v466 = vunpack.c.l.b16 %v433
    %v467 = vunpack.c.l.b16 %v434
    %v468 = vunpack.c.l.b16 %v435
    %v469 = vunpack.c.l.b16 %v436
    %v470 = vunpack.c.l.b16 %v437
    %v471 = vunpack.c.l.b16 %v438
    %v472 = vpack.c.b16 %v457, %v456
    %v473 = vpack.c.b16 %v459, %v458
    %v474 = vpack.c.b16 %v461, %v460
    %v475 = vpack.c.b16 %v463, %v462
    %v476 = vpack.c.b16 %v465, %v464
    %v477 = vpack.c.b16 %v467, %v466
    %v478 = vpack.c.b16 %v469, %v468
    %v479 = vpack.c.b16 %v471, %v470
    %488 = vmatprep.subr.bf16.mxu0 0
    %489 = vmatpush1.bf16.msra.mxu0 %v472
    %490 = vmatprep.subr.bf16.mxu0 0
    %491 = vmatpush1.bf16.msra.mxu0 %v473
    %492 = vmatprep.subr.bf16.mxu0 0
    %493 = vmatpush1.bf16.msra.mxu0 %v474
    %494 = vmatprep.subr.bf16.mxu0 0
    %495 = vmatpush1.bf16.msra.mxu0 %v475
    %496 = vmatprep.subr.bf16.mxu0 0
    %497 = vmatpush1.bf16.msra.mxu0 %v476
    %498 = vmatprep.subr.bf16.mxu0 0
    %499 = vmatpush1.bf16.msra.mxu0 %v477
    %500 = vmatprep.subr.bf16.mxu0 0
    %501 = vmatpush1.bf16.msra.mxu0 %v478
    %502 = vmatprep.subr.bf16.mxu0 0
    %503 = vmatpush1.bf16.msra.mxu0 %v479
    %504 = vmatprep.subr.bf16.mxu0 0
    %505 = vmatpush1.bf16.msra.mxu0 0
    %506 = vmatprep.subr.bf16.mxu0 0
    %507 = vmatpush1.bf16.msra.mxu0 0
    %508 = vmatprep.subr.bf16.mxu0 0
    %509 = vmatpush1.bf16.msra.mxu0 0
    %510 = vmatprep.subr.bf16.mxu0 0
    %511 = vmatpush1.bf16.msra.mxu0 0
    %512 = vmatprep.subr.bf16.mxu0 0
    %513 = vmatpush1.bf16.msra.mxu0 0
    %514 = vmatprep.subr.bf16.mxu0 0
    %515 = vmatpush1.bf16.msra.mxu0 0
    %516 = vmatprep.subr.bf16.mxu0 0
    %517 = vmatpush1.bf16.msra.mxu0 0
    %518 = vmatprep.subr.bf16.mxu0 0
    %519 = vmatpush1.bf16.msra.mxu0 0
    %520 = vmatprep.mubr.bf16.mxu0 0
    %521 = vmatmul.mubr.bf16.gmra.mrb[0].mxu0 %v439
    %v522 = vpop.f32.mrb[0].mxu0
    %v523 = vadd.f32 0.0, %v522
    %v524 = vpop.f32.mrb[0].mxu0
    %v525 = vpop.f32.mrb[0].mxu0
    %v526 = vpop.f32.mrb[0].mxu0
    %527 = vdwg.mxu0
    %v528 = vld [vmem:[#allocation7 + $0x6] sm:$0x1]
    %v529 = vld [vmem:[#allocation7 + $0x7] sm:$0x1]
    %v530 = vrot.slane %v523, 4
    %v531 = vadd.f32 %v523, %v530
    %v532 = vrot.slane %v531, 2
    %v533 = vadd.f32 %v531, %v532
    %v534 = vrot.slane %v533, 1
    %v535 = vadd.f32 %v533, %v534
    %v536 = vmul.f32 %v535, 0.125
    %v537 = vsub.f32 %v523, %v536
    %v538 = vmul.f32 %v537, %v537
    %v539 = vrot.slane %v538, 4
    %v540 = vadd.f32 %v538, %v539
    %v541 = vrot.slane %v540, 2
    %v542 = vadd.f32 %v540, %v541
    %v543 = vrot.slane %v542, 1
    %v544 = vadd.f32 %v542, %v543
    %v545 = vmul.f32 %v544, 0.125
    %v546 = vadd.f32 %v545, 1e-05
    %v547 = vrsqrt.pop %v546
    %v548 = vmul.f32 %v528, %v547
    %v549 = vlaneseq
    %v550 = vshrl.u32 %v549, 7
    %v551 = vsub.s32 0, %v550
    %v552 = vrot.slane %v548, %v551
    %v553 = vmul.f32 %v537, %v552
    %v554 = vlaneseq
    %v555 = vshrl.u32 %v554, 7
    %v556 = vsub.s32 0, %v555
    %v557 = vrot.slane %v529, %v556
    %v558 = vadd.f32 %v553, %v557
    %v559 = vmax.f32 %v558, 0.0
    %v560 = vld [vmem:[#allocation5 + $0xd0] sm:$0xf]
    %v561 = vld [vmem:[#allocation5 + $0xd4] sm:$0xf]
    %v562 = vld [vmem:[#allocation5 + $0xd8] sm:$0xf]
    %v563 = vld [vmem:[#allocation5 + $0xdc] sm:$0xf]
    %v564 = vld [vmem:[#allocation5 + $0xe0] sm:$0xf]
    %v565 = vld [vmem:[#allocation5 + $0xe4] sm:$0xf]
    %v566 = vld [vmem:[#allocation5 + $0xe8] sm:$0xf]
    %v567 = vld [vmem:[#allocation5 + $0xec] sm:$0xf]
    %v568 = vld [vmem:[#allocation5 + $0xf0] sm:$0xf]
    %v569 = vld [vmem:[#allocation5 + $0xf4] sm:$0xf]
    %v570 = vld [vmem:[#allocation5 + $0xf8] sm:$0xf]
    %v571 = vld [vmem:[#allocation5 + $0xfc] sm:$0xf]
    %v572 = vld [vmem:[#allocation5 + $0x100] sm:$0xf]
    %v573 = vld [vmem:[#allocation5 + $0x104] sm:$0xf]
    %v574 = vld [vmem:[#allocation5 + $0x108] sm:$0xf]
    %v575 = vld [vmem:[#allocation5 + $0x10c] sm:$0xf]
    %v576 = vld [vmem:[#allocation7 + $0x8] sm:$0x1]
    %v577 = vpack.c.bf16 %v559, %v559
    %v578 = vlaneseq
    %v579 = vshrl.u32 %v578, 7
    %v580 = vsub.s32 0, %v579
    %v581 = vrot.slane %v576, %v580
    %v598 = vunpack.c.l.b16 %v560
    %v599 = vunpack.c.l.b16 %v561
    %v600 = vunpack.c.l.b16 %v562
    %v601 = vunpack.c.l.b16 %v563
    %v602 = vunpack.c.l.b16 %v564
    %v603 = vunpack.c.l.b16 %v565
    %v604 = vunpack.c.l.b16 %v566
    %v605 = vunpack.c.l.b16 %v567
    %v606 = vunpack.c.l.b16 %v568
    %v607 = vunpack.c.l.b16 %v569
    %v608 = vunpack.c.l.b16 %v570
    %v609 = vunpack.c.l.b16 %v571
    %v610 = vunpack.c.l.b16 %v572
    %v611 = vunpack.c.l.b16 %v573
    %v612 = vunpack.c.l.b16 %v574
    %v613 = vunpack.c.l.b16 %v575
    %v614 = vpack.c.b16 %v599, %v598
    %v615 = vpack.c.b16 %v601, %v600
    %v616 = vpack.c.b16 %v603, %v602
    %v617 = vpack.c.b16 %v605, %v604
    %v618 = vpack.c.b16 %v607, %v606
    %v619 = vpack.c.b16 %v609, %v608
    %v620 = vpack.c.b16 %v611, %v610
    %v621 = vpack.c.b16 %v613, %v612
    %630 = vmatprep.subr.bf16.mxu0 0
    %631 = vmatpush1.bf16.msra.mxu0 %v614
    %632 = vmatprep.subr.bf16.mxu0 0
    %633 = vmatpush1.bf16.msra.mxu0 %v615
    %634 = vmatprep.subr.bf16.mxu0 0
    %635 = vmatpush1.bf16.msra.mxu0 %v616
    %636 = vmatprep.subr.bf16.mxu0 0
    %637 = vmatpush1.bf16.msra.mxu0 %v617
    %638 = vmatprep.subr.bf16.mxu0 0
    %639 = vmatpush1.bf16.msra.mxu0 %v618
    %640 = vmatprep.subr.bf16.mxu0 0
    %641 = vmatpush1.bf16.msra.mxu0 %v619
    %642 = vmatprep.subr.bf16.mxu0 0
    %643 = vmatpush1.bf16.msra.mxu0 %v620
    %644 = vmatprep.subr.bf16.mxu0 0
    %645 = vmatpush1.bf16.msra.mxu0 %v621
    %646 = vmatprep.subr.bf16.mxu0 0
    %647 = vmatpush1.bf16.msra.mxu0 0
    %648 = vmatprep.subr.bf16.mxu0 0
    %649 = vmatpush1.bf16.msra.mxu0 0
    %650 = vmatprep.subr.bf16.mxu0 0
    %651 = vmatpush1.bf16.msra.mxu0 0
    %652 = vmatprep.subr.bf16.mxu0 0
    %653 = vmatpush1.bf16.msra.mxu0 0
    %654 = vmatprep.subr.bf16.mxu0 0
    %655 = vmatpush1.bf16.msra.mxu0 0
    %656 = vmatprep.subr.bf16.mxu0 0
    %657 = vmatpush1.bf16.msra.mxu0 0
    %658 = vmatprep.subr.bf16.mxu0 0
    %659 = vmatpush1.bf16.msra.mxu0 0
    %660 = vmatprep.subr.bf16.mxu0 0
    %661 = vmatpush1.bf16.msra.mxu0 0
    %662 = vmatprep.mubr.bf16.mxu0 0
    %663 = vmatmul.mubr.bf16.gmra.mrb[0].mxu0 %v577
    %v664 = vpop.f32.mrb[0].mxu0
    %v665 = vadd.f32 %v581, %v664
    %v666 = vpop.f32.mrb[0].mxu0
    %v667 = vpop.f32.mrb[0].mxu0
    %v668 = vpop.f32.mrb[0].mxu0
    %669 = vdwg.mxu0
    %670 = vst [vmem:[#allocation8] sm:$0xff] %v665
    // Predicated region
    $region26: #{_forward_padded.1} parent=1 // pred_check
      _
    $region27: #{_forward_padded.1} parent=1 // pred_check_branch
      %672 = sbr.rel (0) target = $region29
    $region28: #{_forward_padded.1} parent=1 // pred_region
      %s674 = ssub.s32 128, 128
      %675 = vsyncadd [#allocation4], %s674
      %s677 = sshll.u32 [#allocation8], 4
      %s678 = int_to_ptr.vmem [resolvable:$true] %s677
      %680 = dma.vmem_to_hbm [thread:$0]  %s678, 128, %s3, [#allocation4]
    $region29: #{_forward_padded.1} parent=1 // pred_fallthru
      _
    // Predicated region
    $region30: #{_forward_padded.1} parent=1 // pred_check
      _
    $region31: #{_forward_padded.1} parent=1 // pred_check_branch
      %682 = sbr.rel (0) target = $region33
    $region32: #{_forward_padded.1} parent=1 // pred_region
      %683 = dma.done [#allocation4], 128
    $region33: #{_forward_padded.1} parent=1 // pred_fallthru
      _
    %684 = vsyncpa [#allocation3], 1
    %685 = vsyncpa [#allocation6], 1
    %686 = vsyncpa [#allocation4], 1

</llo_original>
